<compile_context>
chip_gen: v7x
topology: tpu7x:2x2x1
jax: 0.10.0
libtpu: 0.0.40
codegen_flags: <defaults>
</compile_context>

<pallas_src>
import functools

import jax
import jax.numpy as jnp
from jax.experimental import pallas as pl
from jax.experimental.pallas import tpu as pltpu

EPS = 1e-6


def _residual_norm_kernel(alpha_ref, bias_ref, x_ref, o_ref, *, hidden: int):
    # alpha_ref / bias_ref are scalar parameters in SMEM, shape (1,).
    x = x_ref[...]                                   # (tile_rows, hidden)
    xf = x if x.dtype == jnp.float32 else x.astype(jnp.float32)

    # One-pass reduction: sum(x) and sum(x*x) -> mean / unbiased variance.
    inv_n = jnp.float32(1.0 / hidden)
    sum_x = jnp.sum(xf, axis=-1, keepdims=True)      # (tile_rows, 1)
    sum_x2 = jnp.sum(xf * xf, axis=-1, keepdims=True)
    mean = sum_x * inv_n
    var = (sum_x2 - sum_x * mean) * jnp.float32(1.0 / (hidden - 1))
    var = jnp.maximum(var, jnp.float32(0.0))         # guard one-pass cancellation
    std = jnp.sqrt(var)

    # Exact per-row reciprocal on the (tile_rows, 1) column (approx=True would
    # violate the 1e-5 tolerance vs. the exact-divide reference); fold alpha,
    # bias and the residual add so the per-element path is one fused mul-add.
    s = alpha_ref[0] * pl.reciprocal(std + jnp.float32(EPS), approx=False)
    a = jnp.float32(1.0) + s                         # (tile_rows, 1)
    b = bias_ref[0] - mean * s                       # (tile_rows, 1)

    # out = x + alpha*(x - mean)/(std + eps) + bias == x*a + b
    o_ref[...] = (xf * a + b).astype(o_ref.dtype)


def _vmem_capacity_bytes() -> int:
    try:
        return int(pltpu.get_tpu_info().vmem_capacity_bytes)
    except Exception:
        return 64 * 1024 * 1024  # conservative fallback (v7x per-TensorCore)


def _num_tensorcores_per_chip() -> int:
    try:
        kind = jax.devices()[0].device_kind.lower()
        if "v7" in kind:
            return 2
    except Exception:
        pass
    return 1


def _choose_tile_rows(rows: int, hidden: int, itemsize: int,
                      vmem_cap: int, num_tc: int) -> int:
    # Sublane multiple: (8,128) f32, (16,128) bf16, (32,128) int8/fp8.
    sub = max(8, 32 // itemsize)
    # Target input-tile size: big enough to amortize the ~0.35us per-step cost
    # (85%+ of measured HBM roofline at >=1-4 MiB tiles), small enough that the
    # double-buffered in+out working set (4 tiles) plus f32 temps fits the
    # generation's VMEM (64 MiB on v7x, 128 MiB on v5e/v6e).
    tile_target_bytes = min(vmem_cap // 12, 8 * 1024 * 1024)
    max_rows = max(sub, (tile_target_bytes // (hidden * itemsize)) // sub * sub)

    if rows <= max_rows:
        # Whole problem fits one block (full row extent => always layout-legal,
        # no padding).  Only on 2-TensorCore chips (v7x) split into two
        # balanced halves, and only when each half is big enough to matter.
        if (num_tc >= 2 and rows % (2 * sub) == 0
                and (rows // 2) * hidden * itemsize >= 512 * 1024):
            return rows // 2
        return rows

    # Prefer an exact divisor near the cap (no ragged boundary block).
    t = max_rows
    floor = max(sub, max_rows // 2)
    while t >= floor:
        if rows % t == 0:
            return t
        t -= sub
    # No good divisor: use the cap and let Pallas mask the ragged tail block
    # (safe: the reduction is strictly per-row, tail rows are discarded).
    return max_rows


def residual_connection_forward(x, alpha, bias):
    """ResidualConnection forward with identity sublayer, dropout in eval mode.

    x:     (..., hidden)
    alpha: (1,) scale parameter of the LayerNormalization
    bias:  (1,) shift parameter of the LayerNormalization
    """
    orig_shape = x.shape
    hidden = orig_shape[-1]
    rows = 1
    for d in orig_shape[:-1]:
        rows *= int(d)
    x2d = x.reshape(rows, hidden)

    itemsize = jnp.dtype(x.dtype).itemsize
    vmem_cap = _vmem_capacity_bytes()
    tile_rows = _choose_tile_rows(rows, hidden, itemsize, vmem_cap,
                                  _num_tensorcores_per_chip())
    grid = (pl.cdiv(rows, tile_rows),)

    kernel = functools.partial(_residual_norm_kernel, hidden=hidden)
    vmem_limit = min(vmem_cap * 3 // 4, 96 * 1024 * 1024)

    out2d = pl.pallas_call(
        kernel,
        out_shape=jax.ShapeDtypeStruct((rows, hidden), x.dtype),
        grid=grid,
        in_specs=[
            pl.BlockSpec(memory_space=pltpu.MemorySpace.SMEM),    # alpha
            pl.BlockSpec(memory_space=pltpu.MemorySpace.SMEM),    # bias
            pl.BlockSpec((tile_rows, hidden), lambda i: (i, 0)),  # x tile
        ],
        out_specs=pl.BlockSpec((tile_rows, hidden), lambda i: (i, 0)),
        compiler_params=pltpu.CompilerParams(
            dimension_semantics=("parallel",),
            vmem_limit_bytes=vmem_limit,
        ),
    )(alpha, bias, x2d)

    return out2d.reshape(orig_shape)


def _reference(x, alpha, bias):
    mean = jnp.mean(x, axis=-1, keepdims=True)
    std = jnp.sqrt(jnp.var(x, axis=-1, keepdims=True, ddof=1))
    normed = alpha * (x - mean) / (std + EPS) + bias
    return x + normed  # identity sublayer, dropout in eval mode


if __name__ == "__main__":
    key = jax.random.PRNGKey(0)
    batch, seq, hidden = 2, 8, 32

    x = jax.random.normal(key, (batch, seq, hidden), dtype=jnp.float32)

    # Deterministic parameter init, matching nn.Parameter(torch.ones(1)/zeros(1)).
    alpha = jnp.ones((1,), dtype=jnp.float32)
    bias = jnp.zeros((1,), dtype=jnp.float32)

    out = residual_connection_forward(x, alpha, bias)
    out = jax.block_until_ready(out)

    ref = _reference(x, alpha[0], bias[0])
    assert out.shape == x.shape
    assert jnp.allclose(out, ref, atol=1e-5, rtol=1e-5), "mismatch vs reference"

    print("KERNEL_OK")
</pallas_src>

<mosaic_0001>
module attributes {stable_mosaic.version = 11 : i64} {
  func.func @_residual_norm_kernel(%arg0: i32, %arg1: memref<1xf32, #tpu.memory_space<smem>>, %arg2: memref<1xf32, #tpu.memory_space<smem>>, %arg3: memref<16x32xf32, #tpu.memory_space<vmem>>, %arg4: memref<16x32xf32, #tpu.memory_space<vmem>>) attributes {dimension_semantics = [#tpu.dimension_semantics<parallel>], iteration_bounds = array<i64: 1>, scalar_prefetch = 0 : i64, scratch_operands = 0 : i64, tpu.core_type = #tpu.core_type<tc>, window_params = [{transform_indices = @transform_0, window_bounds = array<i64: 1>}, {transform_indices = @transform_1, window_bounds = array<i64: 1>}, {transform_indices = @transform_2, window_bounds = array<i64: 16, 32>}, {transform_indices = @transform_3, window_bounds = array<i64: 16, 32>}]} {
    %c0 = arith.constant 0 : index
    %c0_0 = arith.constant 0 : index
    %0 = vector.load %arg3[%c0, %c0_0] : memref<16x32xf32, #tpu.memory_space<vmem>>, vector<16x32xf32>
    %cst = arith.constant dense<0.000000e+00> : vector<16xf32>
    %1 = vector.multi_reduction <add>, %0, %cst [1] : vector<16x32xf32> to vector<16xf32>
    %2 = vector.shape_cast %1 : vector<16xf32> to vector<16x1xf32>
    %3 = arith.mulf %0, %0 : vector<16x32xf32>
    %cst_1 = arith.constant dense<0.000000e+00> : vector<16xf32>
    %4 = vector.multi_reduction <add>, %3, %cst_1 [1] : vector<16x32xf32> to vector<16xf32>
    %5 = vector.shape_cast %4 : vector<16xf32> to vector<16x1xf32>
    %cst_2 = arith.constant 3.125000e-02 : f32
    %6 = vector.broadcast %cst_2 : f32 to vector<16x1xf32>
    %7 = arith.mulf %2, %6 : vector<16x1xf32>
    %8 = arith.mulf %2, %7 : vector<16x1xf32>
    %9 = arith.subf %5, %8 : vector<16x1xf32>
    %cst_3 = arith.constant 0.0322580636 : f32
    %10 = vector.broadcast %cst_3 : f32 to vector<16x1xf32>
    %11 = arith.mulf %9, %10 : vector<16x1xf32>
    %cst_4 = arith.constant 0.000000e+00 : f32
    %12 = vector.broadcast %cst_4 : f32 to vector<16x1xf32>
    %13 = arith.maximumf %11, %12 : vector<16x1xf32>
    %14 = math.sqrt %13 : vector<16x1xf32>
    %c0_5 = arith.constant 0 : index
    %15 = memref.load %arg1[%c0_5] : memref<1xf32, #tpu.memory_space<smem>>
    %cst_6 = arith.constant 9.99999997E-7 : f32
    %16 = vector.broadcast %cst_6 : f32 to vector<16x1xf32>
    %17 = arith.addf %14, %16 : vector<16x1xf32>
    %18 = tpu.reciprocal %17 : vector<16x1xf32> -> vector<16x1xf32>
    %19 = vector.broadcast %15 : f32 to vector<16x1xf32>
    %20 = arith.mulf %19, %18 : vector<16x1xf32>
    %cst_7 = arith.constant 1.000000e+00 : f32
    %21 = vector.broadcast %cst_7 : f32 to vector<16x1xf32>
    %22 = arith.addf %21, %20 : vector<16x1xf32>
    %c0_8 = arith.constant 0 : index
    %23 = memref.load %arg2[%c0_8] : memref<1xf32, #tpu.memory_space<smem>>
    %24 = arith.mulf %7, %20 : vector<16x1xf32>
    %25 = vector.broadcast %23 : f32 to vector<16x1xf32>
    %26 = arith.subf %25, %24 : vector<16x1xf32>
    %27 = vector.broadcast %22 : vector<16x1xf32> to vector<16x32xf32>
    %28 = arith.mulf %0, %27 : vector<16x32xf32>
    %29 = vector.broadcast %26 : vector<16x1xf32> to vector<16x32xf32>
    %30 = arith.addf %28, %29 : vector<16x32xf32>
    %c0_9 = arith.constant 0 : index
    %c0_10 = arith.constant 0 : index
    %31 = vector.load %arg4[%c0_9, %c0_10] : memref<16x32xf32, #tpu.memory_space<vmem>>, vector<16x32xf32>
    tpu.vector_store %arg4[%c0_9, %c0_10], %30 {strides = array<i32>} : memref<16x32xf32, #tpu.memory_space<vmem>>, vector<16x32xf32>,
    return
  }
  func.func @transform_0(%arg0: i32) -> i32 {
    %c0_i32 = arith.constant 0 : i32
    %c0_i32_0 = arith.constant 0 : i32
    return %c0_i32 : i32
  }
  func.func @transform_1(%arg0: i32) -> i32 {
    %c0_i32 = arith.constant 0 : i32
    %c0_i32_0 = arith.constant 0 : i32
    return %c0_i32 : i32
  }
  func.func @transform_2(%arg0: i32) -> (i32, i32) {
    %c0_i32 = arith.constant 0 : i32
    %c0_i32_0 = arith.constant 0 : i32
    return %arg0, %c0_i32 : i32, i32
  }
  func.func @transform_3(%arg0: i32) -> (i32, i32) {
    %c0_i32 = arith.constant 0 : i32
    %c0_i32_0 = arith.constant 0 : i32
    return %arg0, %c0_i32 : i32, i32
  }
}

</mosaic_0001>

<llo_original>
// kernel: tpu_custom_call.1
$region0: #{tpu_custom_call.1}
  #allocation0 [shape = 'u32[]', space=smem, size = 0x4, offset = 0x4, fixed_abs, tag = 'smem constant byte address 0x4 - core index']
  #allocation1 [shape = 'u32[144,128]{1,0:T(1,128)}', space=vmem, size = 0x12000, scoped, tag = 'internal scratch']
  #allocation2 [shape = 'f32[1]{0:T(128)S(6)}', space=smem, size = 0x200, scoped, tag = 'scoped memory for tpu_custom_call.1']
  #allocation3 [shape = 'f32[1]{0:T(128)S(6)}', space=smem, size = 0x200, scoped, tag = 'scoped memory for tpu_custom_call.1']
  %s0 = inlined_call_operand.<no memory space> [shape: f32[1], index: 0, kind: input, shape index: {}]
  %s1 = inlined_call_operand.<no memory space> [shape: f32[1], index: 1, kind: input, shape index: {}]
  %s2 = inlined_call_operand.hbm [shape: f32[16,32], index: 2, kind: input, shape index: {}]
  %s3 = inlined_call_operand.hbm [shape: f32[16,32], index: 3, kind: output, shape index: {}]
  %s4 = sld [smem:[#allocation0]]
  $region26: #{tpu_custom_call.1} parent=0
    _
  %s6 = ssub.s32 1, %s4
  %s7 = scalar_select 0, %s6, %s4
  %8 = sst [smem:[#allocation2]] %s0
  %9 = sst [smem:[#allocation3]] %s1
  $region1: #{tpu_custom_call.1} parent=0
    #allocation4 [shape = 'u8[8192]{0}', space=vmem, size = 0x2000, scoped, tag = 'input window, operand 2, single buffered']
    #allocation5 [shape = 's32[1]{0}', space=sflag, size = 0x4, scoped, tag = 'scoped memory for tpu_custom_call.1']
    #allocation6 [shape = 's32[1]{0}', space=sflag, size = 0x4, scoped, tag = 'scoped memory for tpu_custom_call.1']
    #allocation7 [shape = 'u8[8192]{0}', space=vmem, size = 0x2000, scoped, tag = 'output window, operand 0, single buffered']
    %10 = vsyncpa [#allocation5], 0
    %11 = vsyncpa [#allocation6], 0
    // Predicated region
    $region2: #{tpu_custom_call.1} parent=1 // pred_check
      _
    $region3: #{tpu_custom_call.1} parent=1 // pred_check_branch
      %13 = sbr.rel (0) target = $region5
    $region4: #{tpu_custom_call.1} parent=1 // pred_region
      _
    $region5: #{tpu_custom_call.1} parent=1 // pred_fallthru
      _
    // Predicated region
    $region6: #{tpu_custom_call.1} parent=1 // pred_check
      _
    $region7: #{tpu_custom_call.1} parent=1 // pred_check_branch
      %15 = sbr.rel (0) target = $region9
    $region8: #{tpu_custom_call.1} parent=1 // pred_region
      _
    $region9: #{tpu_custom_call.1} parent=1 // pred_fallthru
      _
    // Predicated region
    $region10: #{tpu_custom_call.1} parent=1 // pred_check
      _
    $region11: #{tpu_custom_call.1} parent=1 // pred_check_branch
      %17 = sbr.rel (0) target = $region13
    $region12: #{tpu_custom_call.1} parent=1 // pred_region
      %s19 = ssub.s32 256, 256
      %20 = vsyncadd [#allocation5], %s19
      %s21 = sshll.u32 [#allocation4], 4
      %s22 = int_to_ptr.vmem [resolvable:$true] %s21
      %27 = dma.hbm_to_vmem [thread:$0]  %s2, 256, %s22, [#allocation5], 128, 128, 8
    $region13: #{tpu_custom_call.1} parent=1 // pred_fallthru
      _
    // Predicated region
    $region14: #{tpu_custom_call.1} parent=1 // pred_check
      _
    $region15: #{tpu_custom_call.1} parent=1 // pred_check_branch
      %29 = sbr.rel (0) target = $region17
    $region16: #{tpu_custom_call.1} parent=1 // pred_region
      %30 = dma.done [#allocation5], 256
    $region17: #{tpu_custom_call.1} parent=1 // pred_fallthru
      _
    %v31 = vld [vmem:[#allocation4] sm:$0xff]
    %v32 = vld [vmem:[#allocation4 + $0x8] sm:$0xff]
    %vm33 = vcmask 261120
    %v34 = vsel %vm33, %v31, 0.0
    %35 = vadd.xlane.f32.xlu0 %v34
    %v36 = vpop.xlane.xlu0 %35
    %v37 = vsel %vm33, %v32, 0.0
    %38 = vadd.xlane.f32.xlu0 %v37
    %v39 = vpop.xlane.xlu0 %38
    %v40 = vmul.f32 %v31, %v31
    %v41 = vmul.f32 %v32, %v32
    %v42 = vsel %vm33, %v40, 0.0
    %43 = vadd.xlane.f32.xlu0 %v42
    %v44 = vpop.xlane.xlu0 %43
    %v45 = vsel %vm33, %v41, 0.0
    %46 = vadd.xlane.f32.xlu0 %v45
    %v47 = vpop.xlane.xlu0 %46
    %v48 = vmul.f32 %v36, 0.03125
    %v49 = vmul.f32 %v39, 0.03125
    %v50 = vmul.f32 %v36, %v48
    %v51 = vmul.f32 %v39, %v49
    %v52 = vsub.f32 %v44, %v50
    %v53 = vsub.f32 %v47, %v51
    %v54 = vmul.f32 %v52, 0.032258064
    %v55 = vmul.f32 %v53, 0.032258064
    %v56 = vmax.f32 %v54, 0.0
    %v57 = vmax.f32 %v55, 0.0
    %v58 = vrsqrt.pop %v56
    %v59 = vmul.f32 %v56, %v58
    %vm60 = vcmp.eq.f32.partialorder %v56, inf
    %v61 = vsel %vm60, %v56, %v59
    %vm62 = vcmp.eq.f32.partialorder %v56, 0.0
    %v63 = vand.u32 %v56, 2147483648
    %v64 = vsel %vm62, %v63, %v61
    %v65 = vrsqrt.pop %v57
    %v66 = vmul.f32 %v57, %v65
    %vm67 = vcmp.eq.f32.partialorder %v57, inf
    %v68 = vsel %vm67, %v57, %v66
    %vm69 = vcmp.eq.f32.partialorder %v57, 0.0
    %v70 = vand.u32 %v57, 2147483648
    %v71 = vsel %vm69, %v70, %v68
    %s72 = sld [smem:[#allocation2]]
    %v73 = vadd.f32 %v64, 1e-06
    %v74 = vadd.f32 %v71, 1e-06
    %v75 = vrcp.pop %v73
    %v76 = vrcp.pop %v74
    %v77 = vstv %s72
    %v78 = vmul.f32 %v77, %v75
    %v79 = vmul.f32 %v77, %v76
    %v80 = vadd.f32 %v78, 1.0
    %v81 = vadd.f32 %v79, 1.0
    %s82 = sld [smem:[#allocation3]]
    %v83 = vmul.f32 %v48, %v78
    %v84 = vmul.f32 %v49, %v79
    %v85 = vstv %s82
    %v86 = vsub.f32 %v85, %v83
    %v87 = vsub.f32 %v85, %v84
    %v88 = vmul.f32 %v31, %v80
    %v89 = vmul.f32 %v32, %v81
    %v90 = vadd.f32 %v88, %v86
    %v91 = vadd.f32 %v89, %v87
    %92 = vst.msk [vmem:[#allocation7] sm:$0xff] %vm33, %v90
    %93 = vst.msk [vmem:[#allocation7 + $0x8] sm:$0xff] %vm33, %v91
    // Predicated region
    $region18: #{tpu_custom_call.1} parent=1 // pred_check
      _
    $region19: #{tpu_custom_call.1} parent=1 // pred_check_branch
      %95 = sbr.rel (0) target = $region21
    $region20: #{tpu_custom_call.1} parent=1 // pred_region
      %s97 = ssub.s32 256, 256
      %98 = vsyncadd [#allocation6], %s97
      %s99 = sshll.u32 [#allocation7], 4
      %s100 = int_to_ptr.vmem [resolvable:$true] %s99
      %105 = dma.vmem_to_hbm [thread:$0]  %s100, 256, %s3, [#allocation6], 128, 128, 8
    $region21: #{tpu_custom_call.1} parent=1 // pred_fallthru
      _
    // Predicated region
    $region22: #{tpu_custom_call.1} parent=1 // pred_check
      _
    $region23: #{tpu_custom_call.1} parent=1 // pred_check_branch
      %107 = sbr.rel (0) target = $region25
    $region24: #{tpu_custom_call.1} parent=1 // pred_region
      %108 = dma.done [#allocation6], 256
    $region25: #{tpu_custom_call.1} parent=1 // pred_fallthru
      _
    %109 = vsyncpa [#allocation5], 1
    %110 = vsyncpa [#allocation6], 1

</llo_original>
